<compile_context>
chip_gen: v5e
topology: v5e:2x2
jax: 0.10.0
libtpu: 0.0.40
codegen_flags: <defaults>
</compile_context>

<pallas_src>
import functools

import jax
import jax.numpy as jnp
from jax.experimental import pallas as pl
from jax.experimental.pallas import tpu as pltpu

LANES = 128      # lane width of a vreg (fast axis)
SUBLANES = 8     # sublane alignment
MAX_TB = 512     # max row-block per grid step (512*128*4B = 256 KiB per tile)


def _clone_kernel(x_ref, o_ref):
    # Pure tiled copy: o = x.clone()
    o_ref[...] = x_ref[...]


def _pallas_clone_2d(x2d, tb):
    rows, lanes = x2d.shape
    grid = (rows // tb,)
    return pl.pallas_call(
        _clone_kernel,
        out_shape=jax.ShapeDtypeStruct((rows, lanes), x2d.dtype),
        grid_spec=pltpu.PrefetchScalarGridSpec(
            num_scalar_prefetch=0,
            grid=grid,
            in_specs=[pl.BlockSpec((tb, lanes), lambda i: (i, 0))],
            out_specs=pl.BlockSpec((tb, lanes), lambda i: (i, 0)),
        ),
        compiler_params=pltpu.CompilerParams(
            dimension_semantics=("parallel",)),
    )(x2d)


@functools.partial(jax.jit, static_argnames=())
def pallas_clone(x):
    """Pallas equivalent of torch.Tensor.clone(): lane-dense tiled HBM copy."""
    orig_shape = x.shape
    flat = jnp.ravel(x)
    n = flat.shape[0]

    # Lane-dense view: [rows, 128]; row block capped at MAX_TB, sublane-aligned.
    rows = max(1, pl.cdiv(n, LANES))
    tb = min(MAX_TB, ((rows + SUBLANES - 1) // SUBLANES) * SUBLANES)
    rows_pad = ((rows + tb - 1) // tb) * tb
    n_pad = rows_pad * LANES

    if n_pad == n:
        flat_p = flat                       # no wrapper-side pad pass needed
    else:
        flat_p = jnp.zeros((n_pad,), x.dtype).at[:n].set(flat)

    out2d = _pallas_clone_2d(flat_p.reshape(rows_pad, LANES), tb)
    return out2d.reshape(-1)[:n].reshape(orig_shape)


def gpnet1_1_1_forward(x_train=None, y_train=None, phi=None, sq_lambda=None,
                       L=None, x_test=None):
    """Forward of gpnet1_1_1.

    y_train is None  -> out = x_train.clone()   (implemented, Pallas kernel)
    y_train not None -> out = gp(y_train, phi, sq_lambda, L, x_test)
                        (gprh.GP_new: not available, cannot be ported)
    """
    if y_train is not None:
        # TODO(synk): gprh.GP_new spectral-GP solve is an external dependency
        # with no definition given; only the pass-through path is implemented.
        raise NotImplementedError("gprh.GP_new GP solve is not available")
    if x_train is None:
        return None
    return pallas_clone(x_train)


if __name__ == "__main__":
    key = jax.random.PRNGKey(0)

    # Small, module-consistent shape: 256 one-dimensional GP training inputs.
    N, D = 256, 1
    x_train = jax.random.normal(key, (N, D), jnp.float32)

    out = gpnet1_1_1_forward(x_train=x_train)
    out = jax.block_until_ready(out)

    assert out.shape == x_train.shape, out.shape
    assert out.dtype == x_train.dtype, out.dtype
    assert bool(jnp.array_equal(out, x_train)), (
        f"max abs err {jnp.max(jnp.abs(out - x_train))}")

    print("KERNEL_OK")
</pallas_src>

<mosaic_0001>
module attributes {stable_mosaic.version = 11 : i64} {
  func.func @_clone_kernel(%arg0: i32, %arg1: memref<8x128xf32, #tpu.memory_space<vmem>>, %arg2: memref<8x128xf32, #tpu.memory_space<vmem>>) attributes {dimension_semantics = [#tpu.dimension_semantics<parallel>], iteration_bounds = array<i64: 1>, scalar_prefetch = 0 : i64, scratch_operands = 0 : i64, tpu.core_type = #tpu.core_type<tc>, window_params = [{transform_indices = @transform_0, window_bounds = array<i64: 8, 128>}, {transform_indices = @transform_1, window_bounds = array<i64: 8, 128>}]} {
    %c0 = arith.constant 0 : index
    %c0_0 = arith.constant 0 : index
    %0 = vector.load %arg1[%c0, %c0_0] : memref<8x128xf32, #tpu.memory_space<vmem>>, vector<8x128xf32>
    %c0_1 = arith.constant 0 : index
    %c0_2 = arith.constant 0 : index
    %1 = vector.load %arg2[%c0_1, %c0_2] : memref<8x128xf32, #tpu.memory_space<vmem>>, vector<8x128xf32>
    tpu.vector_store %arg2[%c0_1, %c0_2], %0 {strides = array<i32>} : memref<8x128xf32, #tpu.memory_space<vmem>>, vector<8x128xf32>,
    return
  }
  func.func @transform_0(%arg0: i32) -> (i32, i32) {
    %c0_i32 = arith.constant 0 : i32
    %c0_i32_0 = arith.constant 0 : i32
    return %arg0, %c0_i32 : i32, i32
  }
  func.func @transform_1(%arg0: i32) -> (i32, i32) {
    %c0_i32 = arith.constant 0 : i32
    %c0_i32_0 = arith.constant 0 : i32
    return %arg0, %c0_i32 : i32, i32
  }
}

</mosaic_0001>

<llo_original>
// kernel: pallas_clone.1
$region0: #{pallas_clone.1}
  #allocation0 [shape = 'u32[]', space=smem, size = 0x4, offset = 0x4, fixed_abs, tag = 'smem constant byte address 0x4 - core index']
  #allocation1 [shape = 'u32[72,128]{1,0:T(1,128)}', space=vmem, size = 0x9000, scoped, tag = 'internal scratch']
  %s0 = inlined_call_operand.vmem [shape: f32[8,128], index: 0, kind: input, shape index: {}]
  %s1 = inlined_call_operand.vmem [shape: f32[8,128], index: 1, kind: output, shape index: {}]
  %s2 = sld [smem:[#allocation0]]
  $region14: #{pallas_clone.1} parent=0
    _
  %s4 = ssub.s32 1, %s2
  %s5 = scalar_select 0, %s4, %s2
  // Predicated region
  $region2: #{pallas_clone.1} parent=0 // pred_check
    _
  $region3: #{pallas_clone.1} parent=0 // pred_check_branch
    %7 = sbr.rel (0) target = $region5
  $region4: #{pallas_clone.1} parent=0 // pred_region
    _
  $region5: #{pallas_clone.1} parent=0 // pred_fallthru
    _
  %v8 = vld [vmem:[%s0] sm:$0xff]
  %9 = vst [vmem:[%s1] sm:$0xff] %v8
  // Predicated region
  $region6: #{pallas_clone.1} parent=0 // pred_check
    _
  $region7: #{pallas_clone.1} parent=0 // pred_check_branch
    %11 = sbr.rel (0) target = $region9
  $region8: #{pallas_clone.1} parent=0 // pred_region
    _
  $region9: #{pallas_clone.1} parent=0 // pred_fallthru
    _
  // Predicated region
  $region10: #{pallas_clone.1} parent=0 // pred_check
    _
  $region11: #{pallas_clone.1} parent=0 // pred_check_branch
    %13 = sbr.rel (0) target = $region13
  $region12: #{pallas_clone.1} parent=0 // pred_region
    _
  $region13: #{pallas_clone.1} parent=0 // pred_fallthru
    _

</llo_original>
